<compile_context>
chip_gen: v6e
topology: v6e:2x2x1
jax: 0.10.0
libtpu: 0.0.40
codegen_flags: <defaults>
</compile_context>

<pallas_src>
import functools
import math

import jax
import jax.numpy as jnp
from jax.experimental import pallas as pl
from jax.experimental.pallas import tpu as pltpu


def _round_up(x, m):
    return ((x + m - 1) // m) * m


def _cross_attn_kernel(enc_ref, dec_ref, wv_ref, bv_ref, wk_ref, bk_ref,
                       wq_ref, bq_ref, out_ref, *, d_k):
    """One grid step == one batch element (grid axis marked 'parallel')."""
    enc = enc_ref[0]                                   # (S_enc, E_enc) bf16
    dec = dec_ref[0]                                   # (S_dec, E_dec) bf16

    # Projections: bf16 operands on the MXU, f32 accumulation, f32 bias add.
    v = jnp.dot(enc, wv_ref[...], preferred_element_type=jnp.float32) + bv_ref[...]   # (S_enc, D_pad)
    k = jnp.dot(enc, wk_ref[...], preferred_element_type=jnp.float32) + bk_ref[...]   # (S_enc, Dk_pad)
    inv_scale = 1.0 / math.sqrt(d_k)
    q = (jnp.dot(dec, wq_ref[...], preferred_element_type=jnp.float32)
         + bq_ref[...]) * inv_scale                    # scale folded into the small q tensor

    # Scores: contract the last dims of q and k directly (no explicit transpose),
    # bf16 in / f32 out. Padded d_k columns are exactly zero, so they contribute 0.
    scores = jax.lax.dot_general(
        q.astype(jnp.bfloat16), k.astype(jnp.bfloat16),
        dimension_numbers=(((1,), (1,)), ((), ())),
        preferred_element_type=jnp.float32)            # (S_dec, S_enc)

    # Numerically stable softmax over the encoder axis (exact reciprocal on the EUP).
    scores = scores - jnp.max(scores, axis=-1, keepdims=True)
    p = jnp.exp(scores)
    attn = p * pl.reciprocal(jnp.sum(p, axis=-1, keepdims=True), approx=False)

    ctx = jnp.dot(attn.astype(jnp.bfloat16), v.astype(jnp.bfloat16),
                  preferred_element_type=jnp.float32)  # (S_dec, D_pad), lane-dense
    out_ref[0] = ctx.astype(out_ref.dtype)


def cross_attention(encoder_input, decoder_input, params, d_k):
    """encoder_input: (B, S_enc, E_enc); decoder_input: (B, S_dec, E_dec)."""
    B, S_enc, E_enc = encoder_input.shape
    _, S_dec, E_dec = decoder_input.shape
    wv, bv, wk, bk, wq, bq = params
    D_dec = wv.shape[1]

    # Lane-dense padding of the projection output widths (multiples of 128).
    # Padded weight/bias columns are zero -> results unchanged; pad sliced off below.
    D_pad = _round_up(D_dec, 128)
    Dk_pad = _round_up(d_k, 128)

    def pad_last(x, target):
        pad = target - x.shape[-1]
        if pad == 0:
            return x
        return jnp.pad(x, [(0, 0)] * (x.ndim - 1) + [(0, pad)])

    # TODO(synk): hoist this static weight padding / bf16 cast out of the
    # per-call path (pre-store padded bf16 weights) when weights are static.
    wv_p = pad_last(wv, D_pad).astype(jnp.bfloat16)
    wk_p = pad_last(wk, Dk_pad).astype(jnp.bfloat16)
    wq_p = pad_last(wq, Dk_pad).astype(jnp.bfloat16)
    bv_p = pad_last(bv, D_pad).reshape(1, D_pad).astype(jnp.float32)
    bk_p = pad_last(bk, Dk_pad).reshape(1, Dk_pad).astype(jnp.float32)
    bq_p = pad_last(bq, Dk_pad).reshape(1, Dk_pad).astype(jnp.float32)

    # bf16 activations halve HBM/VMEM traffic; every matmul accumulates in f32.
    enc_b = encoder_input.astype(jnp.bfloat16)
    dec_b = decoder_input.astype(jnp.bfloat16)

    kernel = functools.partial(_cross_attn_kernel, d_k=d_k)

    # Rough VMEM need: double-buffered per-step blocks + resident weights
    # + f32 intermediates; clamp inside v7x's 64 MiB physical VMEM.
    step_bytes = (S_enc * E_enc + S_dec * E_dec) * 2 + S_dec * D_pad * 4
    weight_bytes = ((E_enc * D_pad + E_enc * Dk_pad + E_dec * Dk_pad) * 2
                    + (D_pad + 2 * Dk_pad) * 4)
    interm_bytes = (S_enc * D_pad + S_enc * Dk_pad + S_dec * Dk_pad
                    + S_dec * S_enc) * 4
    est = 2 * step_bytes + weight_bytes + 2 * interm_bytes
    vmem_limit = int(min(max(2 * est, 32 * 1024 * 1024), 64 * 1024 * 1024))

    out_pad = pl.pallas_call(
        kernel,
        out_shape=jax.ShapeDtypeStruct((B, S_dec, D_pad), jnp.float32),
        grid_spec=pltpu.PrefetchScalarGridSpec(
            num_scalar_prefetch=0,
            grid=(B,),
            in_specs=[
                pl.BlockSpec((1, S_enc, E_enc), lambda b: (b, 0, 0)),   # enc  (per batch)
                pl.BlockSpec((1, S_dec, E_dec), lambda b: (b, 0, 0)),   # dec  (per batch)
                pl.BlockSpec((E_enc, D_pad),    lambda b: (0, 0)),      # Wv   (resident)
                pl.BlockSpec((1, D_pad),        lambda b: (0, 0)),      # bv
                pl.BlockSpec((E_enc, Dk_pad),   lambda b: (0, 0)),      # Wk
                pl.BlockSpec((1, Dk_pad),       lambda b: (0, 0)),      # bk
                pl.BlockSpec((E_dec, Dk_pad),   lambda b: (0, 0)),      # Wq
                pl.BlockSpec((1, Dk_pad),       lambda b: (0, 0)),      # bq
            ],
            out_specs=pl.BlockSpec((1, S_dec, D_pad), lambda b: (b, 0, 0)),
        ),
        compiler_params=pltpu.CompilerParams(
            dimension_semantics=("parallel",),
            vmem_limit_bytes=vmem_limit),
    )(enc_b, dec_b, wv_p, bv_p, wk_p, bk_p, wq_p, bq_p)

    # TODO(synk): for long sequences, add a second ("parallel") grid axis over
    # S_dec tiles and tile S_enc with flash-style online softmax so the
    # (S_dec, S_enc) scores block never exceeds v7x's 64 MiB VMEM.
    return out_pad[..., :D_dec]


def reference_cross_attention(encoder_input, decoder_input, params, d_k):
    wv, bv, wk, bk, wq, bq = params
    v = encoder_input @ wv + bv
    k = encoder_input @ wk + bk
    q = decoder_input @ wq + bq
    scores = jnp.einsum("bqd,bkd->bqk", q, k) / (d_k ** 0.5)
    attn = jax.nn.softmax(scores, axis=-1)
    return jnp.einsum("bqk,bkd->bqd", attn, v)


if __name__ == "__main__":
    # Small shapes consistent with the module's forward.
    B = 2
    S_enc, S_dec = 8, 8
    encoder_embed_dim = 32
    decoder_embed_dim = 32
    d_k = 32

    key = jax.random.PRNGKey(0)
    k_enc, k_dec, k_wv, k_bv, k_wk, k_bk, k_wq, k_bq = jax.random.split(key, 8)

    encoder_input = jax.random.normal(k_enc, (B, S_enc, encoder_embed_dim), jnp.float32)
    decoder_input = jax.random.normal(k_dec, (B, S_dec, decoder_embed_dim), jnp.float32)

    # Deterministic synthetic parameters (shapes follow nn.Linear in __init__),
    # stored as (in_features, out_features).
    wv = jax.random.normal(k_wv, (encoder_embed_dim, decoder_embed_dim), jnp.float32) * 0.1
    bv = jax.random.normal(k_bv, (decoder_embed_dim,), jnp.float32) * 0.1
    wk = jax.random.normal(k_wk, (encoder_embed_dim, d_k), jnp.float32) * 0.1
    bk = jax.random.normal(k_bk, (d_k,), jnp.float32) * 0.1
    wq = jax.random.normal(k_wq, (decoder_embed_dim, d_k), jnp.float32) * 0.1
    bq = jax.random.normal(k_bq, (d_k,), jnp.float32) * 0.1
    params = (wv, bv, wk, bk, wq, bq)

    out = cross_attention(encoder_input, decoder_input, params, d_k)
    out = jax.block_until_ready(out)

    ref = reference_cross_attention(encoder_input, decoder_input, params, d_k)
    assert out.shape == (B, S_dec, decoder_embed_dim)
    # Tolerance accounts for bf16 MXU operands (f32 accumulation).
    assert jnp.allclose(out, ref, atol=3e-2, rtol=3e-2), "mismatch vs JAX reference"

    print("KERNEL_OK")
</pallas_src>

<mosaic_0001>
module attributes {stable_mosaic.version = 11 : i64} {
  func.func @_cross_attn_kernel(%arg0: i32, %arg1: memref<1x8x32xbf16, #tpu.memory_space<vmem>>, %arg2: memref<1x8x32xbf16, #tpu.memory_space<vmem>>, %arg3: memref<32x128xbf16, #tpu.memory_space<vmem>>, %arg4: memref<1x128xf32, #tpu.memory_space<vmem>>, %arg5: memref<32x128xbf16, #tpu.memory_space<vmem>>, %arg6: memref<1x128xf32, #tpu.memory_space<vmem>>, %arg7: memref<32x128xbf16, #tpu.memory_space<vmem>>, %arg8: memref<1x128xf32, #tpu.memory_space<vmem>>, %arg9: memref<1x8x128xf32, #tpu.memory_space<vmem>>) attributes {dimension_semantics = [#tpu.dimension_semantics<parallel>], iteration_bounds = array<i64: 2>, scalar_prefetch = 0 : i64, scratch_operands = 0 : i64, tpu.core_type = #tpu.core_type<tc>, window_params = [{transform_indices = @transform_0, window_bounds = array<i64: 1, 8, 32>}, {transform_indices = @transform_1, window_bounds = array<i64: 1, 8, 32>}, {pipeline_mode = #tpu.pipeline_mode<synchronous>, transform_indices = @transform_2, window_bounds = array<i64: 32, 128>}, {pipeline_mode = #tpu.pipeline_mode<synchronous>, transform_indices = @transform_3, window_bounds = array<i64: 1, 128>}, {pipeline_mode = #tpu.pipeline_mode<synchronous>, transform_indices = @transform_4, window_bounds = array<i64: 32, 128>}, {pipeline_mode = #tpu.pipeline_mode<synchronous>, transform_indices = @transform_5, window_bounds = array<i64: 1, 128>}, {pipeline_mode = #tpu.pipeline_mode<synchronous>, transform_indices = @transform_6, window_bounds = array<i64: 32, 128>}, {pipeline_mode = #tpu.pipeline_mode<synchronous>, transform_indices = @transform_7, window_bounds = array<i64: 1, 128>}, {transform_indices = @transform_8, window_bounds = array<i64: 1, 8, 128>}]} {
    %c0 = arith.constant 0 : index
    %c0_0 = arith.constant 0 : index
    %c0_1 = arith.constant 0 : index
    %0 = vector.load %arg1[%c0, %c0_0, %c0_1] : memref<1x8x32xbf16, #tpu.memory_space<vmem>>, vector<1x8x32xbf16>
    %1 = vector.shape_cast %0 : vector<1x8x32xbf16> to vector<8x32xbf16>
    %c0_2 = arith.constant 0 : index
    %c0_3 = arith.constant 0 : index
    %c0_4 = arith.constant 0 : index
    %2 = vector.load %arg2[%c0_2, %c0_3, %c0_4] : memref<1x8x32xbf16, #tpu.memory_space<vmem>>, vector<1x8x32xbf16>
    %3 = vector.shape_cast %2 : vector<1x8x32xbf16> to vector<8x32xbf16>
    %c0_5 = arith.constant 0 : index
    %c0_6 = arith.constant 0 : index
    %4 = vector.load %arg3[%c0_5, %c0_6] : memref<32x128xbf16, #tpu.memory_space<vmem>>, vector<32x128xbf16>
    %cst = arith.constant dense<0.000000e+00> : vector<8x128xf32>
    %5 = tpu.matmul %1, %4, %cst {dimension_numbers = #tpu.dot_dimension_numbers<[1], [0], [0], [1], [0, 0, 1, 1], [], []>} : vector<8x32xbf16>, vector<32x128xbf16>, vector<8x128xf32> -> vector<8x128xf32>
    %c0_7 = arith.constant 0 : index
    %c0_8 = arith.constant 0 : index
    %6 = vector.load %arg4[%c0_7, %c0_8] : memref<1x128xf32, #tpu.memory_space<vmem>>, vector<1x128xf32>
    %7 = vector.broadcast %6 : vector<1x128xf32> to vector<8x128xf32>
    %8 = arith.addf %5, %7 : vector<8x128xf32>
    %c0_9 = arith.constant 0 : index
    %c0_10 = arith.constant 0 : index
    %9 = vector.load %arg5[%c0_9, %c0_10] : memref<32x128xbf16, #tpu.memory_space<vmem>>, vector<32x128xbf16>
    %cst_11 = arith.constant dense<0.000000e+00> : vector<8x128xf32>
    %10 = tpu.matmul %1, %9, %cst_11 {dimension_numbers = #tpu.dot_dimension_numbers<[1], [0], [0], [1], [0, 0, 1, 1], [], []>} : vector<8x32xbf16>, vector<32x128xbf16>, vector<8x128xf32> -> vector<8x128xf32>
    %c0_12 = arith.constant 0 : index
    %c0_13 = arith.constant 0 : index
    %11 = vector.load %arg6[%c0_12, %c0_13] : memref<1x128xf32, #tpu.memory_space<vmem>>, vector<1x128xf32>
    %12 = vector.broadcast %11 : vector<1x128xf32> to vector<8x128xf32>
    %13 = arith.addf %10, %12 : vector<8x128xf32>
    %c0_14 = arith.constant 0 : index
    %c0_15 = arith.constant 0 : index
    %14 = vector.load %arg7[%c0_14, %c0_15] : memref<32x128xbf16, #tpu.memory_space<vmem>>, vector<32x128xbf16>
    %cst_16 = arith.constant dense<0.000000e+00> : vector<8x128xf32>
    %15 = tpu.matmul %3, %14, %cst_16 {dimension_numbers = #tpu.dot_dimension_numbers<[1], [0], [0], [1], [0, 0, 1, 1], [], []>} : vector<8x32xbf16>, vector<32x128xbf16>, vector<8x128xf32> -> vector<8x128xf32>
    %c0_17 = arith.constant 0 : index
    %c0_18 = arith.constant 0 : index
    %16 = vector.load %arg8[%c0_17, %c0_18] : memref<1x128xf32, #tpu.memory_space<vmem>>, vector<1x128xf32>
    %17 = vector.broadcast %16 : vector<1x128xf32> to vector<8x128xf32>
    %18 = arith.addf %15, %17 : vector<8x128xf32>
    %cst_19 = arith.constant 0.176776692 : f32
    %19 = vector.broadcast %cst_19 : f32 to vector<8x128xf32>
    %20 = arith.mulf %18, %19 : vector<8x128xf32>
    %21 = arith.truncf %20 : vector<8x128xf32> to vector<8x128xbf16>
    %22 = arith.truncf %13 : vector<8x128xf32> to vector<8x128xbf16>
    %cst_20 = arith.constant dense<0.000000e+00> : vector<8x8xf32>
    %23 = tpu.matmul %21, %22, %cst_20 {dimension_numbers = #tpu.dot_dimension_numbers<[1], [1], [0], [0], [0, 0, 1, 0], [], []>} : vector<8x128xbf16>, vector<8x128xbf16>, vector<8x8xf32> -> vector<8x8xf32>
    %cst_21 = arith.constant dense<0xFF800000> : vector<8xf32>
    %24 = vector.multi_reduction <maximumf>, %23, %cst_21 [1] : vector<8x8xf32> to vector<8xf32>
    %25 = vector.shape_cast %24 : vector<8xf32> to vector<8x1xf32>
    %26 = vector.broadcast %25 : vector<8x1xf32> to vector<8x8xf32>
    %27 = arith.subf %23, %26 : vector<8x8xf32>
    %28 = math.exp %27 : vector<8x8xf32>
    %cst_22 = arith.constant dense<0.000000e+00> : vector<8xf32>
    %29 = vector.multi_reduction <add>, %28, %cst_22 [1] : vector<8x8xf32> to vector<8xf32>
    %30 = vector.shape_cast %29 : vector<8xf32> to vector<8x1xf32>
    %31 = tpu.reciprocal %30 : vector<8x1xf32> -> vector<8x1xf32>
    %32 = vector.broadcast %31 : vector<8x1xf32> to vector<8x8xf32>
    %33 = arith.mulf %28, %32 : vector<8x8xf32>
    %34 = arith.truncf %33 : vector<8x8xf32> to vector<8x8xbf16>
    %35 = arith.truncf %8 : vector<8x128xf32> to vector<8x128xbf16>
    %cst_23 = arith.constant dense<0.000000e+00> : vector<8x128xf32>
    %36 = tpu.matmul %34, %35, %cst_23 {dimension_numbers = #tpu.dot_dimension_numbers<[1], [0], [0], [1], [0, 0, 1, 1], [], []>} : vector<8x8xbf16>, vector<8x128xbf16>, vector<8x128xf32> -> vector<8x128xf32>
    %c0_24 = arith.constant 0 : index
    %c0_25 = arith.constant 0 : index
    %c0_26 = arith.constant 0 : index
    %37 = vector.load %arg9[%c0_24, %c0_25, %c0_26] : memref<1x8x128xf32, #tpu.memory_space<vmem>>, vector<1x8x128xf32>
    %38 = vector.shape_cast %37 : vector<1x8x128xf32> to vector<8x128xf32>
    %39 = vector.shape_cast %36 : vector<8x128xf32> to vector<1x8x128xf32>
    tpu.vector_store %arg9[%c0_24, %c0_25, %c0_26], %39 {strides = array<i32>} : memref<1x8x128xf32, #tpu.memory_space<vmem>>, vector<1x8x128xf32>,
    return
  }
  func.func @transform_0(%arg0: i32) -> (i32, i32, i32) {
    %c0_i32 = arith.constant 0 : i32
    %c0_i32_0 = arith.constant 0 : i32
    %c0_i32_1 = arith.constant 0 : i32
    return %arg0, %c0_i32, %c0_i32_0 : i32, i32, i32
  }
  func.func @transform_1(%arg0: i32) -> (i32, i32, i32) {
    %c0_i32 = arith.constant 0 : i32
    %c0_i32_0 = arith.constant 0 : i32
    %c0_i32_1 = arith.constant 0 : i32
    return %arg0, %c0_i32, %c0_i32_0 : i32, i32, i32
  }
  func.func @transform_2(%arg0: i32) -> (i32, i32) {
    %c0_i32 = arith.constant 0 : i32
    %c0_i32_0 = arith.constant 0 : i32
    %c0_i32_1 = arith.constant 0 : i32
    return %c0_i32, %c0_i32_0 : i32, i32
  }
  func.func @transform_3(%arg0: i32) -> (i32, i32) {
    %c0_i32 = arith.constant 0 : i32
    %c0_i32_0 = arith.constant 0 : i32
    %c0_i32_1 = arith.constant 0 : i32
    return %c0_i32, %c0_i32_0 : i32, i32
  }
  func.func @transform_4(%arg0: i32) -> (i32, i32) {
    %c0_i32 = arith.constant 0 : i32
    %c0_i32_0 = arith.constant 0 : i32
    %c0_i32_1 = arith.constant 0 : i32
    return %c0_i32, %c0_i32_0 : i32, i32
  }
  func.func @transform_5(%arg0: i32) -> (i32, i32) {
    %c0_i32 = arith.constant 0 : i32
    %c0_i32_0 = arith.constant 0 : i32
    %c0_i32_1 = arith.constant 0 : i32
    return %c0_i32, %c0_i32_0 : i32, i32
  }
  func.func @transform_6(%arg0: i32) -> (i32, i32) {
    %c0_i32 = arith.constant 0 : i32
    %c0_i32_0 = arith.constant 0 : i32
    %c0_i32_1 = arith.constant 0 : i32
    return %c0_i32, %c0_i32_0 : i32, i32
  }
  func.func @transform_7(%arg0: i32) -> (i32, i32) {
    %c0_i32 = arith.constant 0 : i32
    %c0_i32_0 = arith.constant 0 : i32
    %c0_i32_1 = arith.constant 0 : i32
    return %c0_i32, %c0_i32_0 : i32, i32
  }
  func.func @transform_8(%arg0: i32) -> (i32, i32, i32) {
    %c0_i32 = arith.constant 0 : i32
    %c0_i32_0 = arith.constant 0 : i32
    %c0_i32_1 = arith.constant 0 : i32
    return %arg0, %c0_i32, %c0_i32_0 : i32, i32, i32
  }
}

</mosaic_0001>

<llo_original>
// kernel: tpu_custom_call.1
$region0: #{tpu_custom_call.1}
  #allocation0 [shape = 'u32[]', space=smem, size = 0x4, offset = 0x4, fixed_abs, tag = 'smem constant byte address 0x4 - core index']
  #allocation1 [shape = 'u32[144,128]{1,0:T(1,128)}', space=vmem, size = 0x12000, scoped, tag = 'internal scratch']
  %s0 = inlined_call_operand.hbm [shape: bf16[2,8,32], index: 0, kind: input, shape index: {}]
  %s1 = inlined_call_operand.hbm [shape: bf16[2,8,32], index: 1, kind: input, shape index: {}]
  %s2 = inlined_call_operand.hbm [shape: bf16[32,128], index: 2, kind: input, shape index: {}]
  %s3 = inlined_call_operand.vmem [shape: f32[1,128], index: 3, kind: input, shape index: {}]
  %s4 = inlined_call_operand.hbm [shape: bf16[32,128], index: 4, kind: input, shape index: {}]
  %s5 = inlined_call_operand.vmem [shape: f32[1,128], index: 5, kind: input, shape index: {}]
  %s6 = inlined_call_operand.hbm [shape: bf16[32,128], index: 6, kind: input, shape index: {}]
  %s7 = inlined_call_operand.vmem [shape: f32[1,128], index: 7, kind: input, shape index: {}]
  %s8 = inlined_call_operand.hbm [shape: f32[2,8,128], index: 8, kind: output, shape index: {}]
  %s9 = sld [smem:[#allocation0]]
  $region85: #{tpu_custom_call.1} parent=0
    _
  %s11 = ssub.s32 1, %s9
  %s12 = scalar_select 0, %s11, %s9
  $region1: #{tpu_custom_call.1} parent=0
    #allocation2 [shape = 'u8[4096]{0}', space=vmem, size = 0x1000, scoped, tag = 'input window, operand 0']
    #allocation3 [shape = 's32[2]{0}', space=sflag, size = 0x8, scoped, tag = 'scoped memory for tpu_custom_call.1']
    #allocation4 [shape = 's32[2]{0}', space=sflag, size = 0x8, scoped, tag = 'scoped memory for tpu_custom_call.1']
    #allocation5 [shape = 'u8[4096]{0}', space=vmem, size = 0x1000, scoped, tag = 'input window, operand 1']
    #allocation6 [shape = 's32[2]{0}', space=sflag, size = 0x8, scoped, tag = 'scoped memory for tpu_custom_call.1']
    #allocation7 [shape = 'u8[8192]{0}', space=vmem, size = 0x2000, scoped, tag = 'input window, operand 2, single buffered']
    #allocation8 [shape = 'u8[8192]{0}', space=vmem, size = 0x2000, scoped, tag = 'input window, operand 4, single buffered']
    #allocation9 [shape = 's32[1]{0}', space=sflag, size = 0x4, scoped, tag = 'scoped memory for tpu_custom_call.1']
    #allocation10 [shape = 'u8[8192]{0}', space=vmem, size = 0x2000, scoped, tag = 'input window, operand 6, single buffered']
    #allocation11 [shape = 'u8[8192]{0}', space=vmem, size = 0x2000, scoped, tag = 'output window, operand 0']
    %13 = vsyncpa [#allocation3], 0
    %s14 = scalar_lea.sflag [#allocation3], 1
    %15 = vsyncpa %s14, 0
    %16 = vsyncpa [#allocation6], 0
    %s17 = scalar_lea.sflag [#allocation6], 1
    %18 = vsyncpa %s17, 0
    %19 = vsyncpa [#allocation9], 0
    %20 = vsyncpa [#allocation4], 0
    %s21 = scalar_lea.sflag [#allocation4], 1
    %22 = vsyncpa %s21, 0
    loop: start=0, step=1, limit=4
    $region2: #{tpu_custom_call.1} parent=1 // loop_pre_header
      _
    $region3: #{tpu_custom_call.1} parent=1 // loop_header
      %s24 = sphi 0, %s28
      %p25 = scmp.ge.s32.totalorder %s24, 4
      %s34 = sphi 0, %s36
      %s37 = sphi 0, %s34
      %s38 = sphi 0, %s37
      %s54 = sphi 0, %s38
      %s60 = sphi 0, %s62
      %s63 = sphi 0, %s60
      %s64 = sphi 0, %s63
      %s80 = sphi 0, %s64
      %s84 = sphi 0, %s84
      %s86 = sphi 0, %s84
      %s87 = sphi 0, %s86
      %s101 = sphi 0, %s87
      %s105 = sphi 0, %s105
      %s107 = sphi 0, %s105
      %s108 = sphi 0, %s107
      %s122 = sphi 0, %s108
      %s126 = sphi 0, %s126
      %s128 = sphi 0, %s126
      %s129 = sphi 0, %s128
      %s143 = sphi 0, %s129
      %s147 = sphi 0, %s147
      %s149 = sphi 0, %s147
      %s150 = sphi 0, %s149
      %s164 = sphi 0, %s150
      %s168 = sphi 0, %s168
      %s170 = sphi 0, %s168
      %s171 = sphi 0, %s170
      %s185 = sphi 0, %s171
      %s189 = sphi 0, %s189
      %s191 = sphi 0, %s189
      %s192 = sphi 0, %s191
      %s206 = sphi 0, %s192
      %s212 = sphi 0, %s214
      %s215 = sphi 0, %s212
      %s216 = sphi 0, %s215
      %s232 = sphi 0, %s216
    $region4: #{tpu_custom_call.1} parent=1 // loop_header_branch
      %27 = sbr.rel (%p25) target = $region8
    $region5: #{tpu_custom_call.1} parent=1 // loop_body
      %s29 = ssub.s32 %s24, 1
      %s30 = ssub.s32 %s24, 2
      %s31 = sadd.s32 %s24, 1
      %s32 = ssub.s32 %s24, %s31
      %p33 = scmp.eq.s32.totalorder %s32, 0
      %s35 = sadd.s32 %s34, 1
      %s36 = scalar_select %p33, %s34, %s35
      %p39 = pneg %p33
      %p40 = scmp.eq.s32.totalorder %s24, 1
      %p41 = por %p39, %p40
      %p42 = scmp.ne.s32.totalorder %s34, %s37
      %p43 = scmp.eq.s32.totalorder %s24, 0
      %p44 = por %p42, %p43
      %p45 = scmp.ne.s32.totalorder %s34, %s37
      %p46 = scmp.eq.s32.totalorder %s29, 1
      %p47 = por %p45, %p46
      %p48 = scmp.ne.s32.totalorder %s37, %s38
      %p49 = scmp.eq.s32.totalorder %s29, 0
      %p50 = por %p48, %p49
      %p51 = scmp.ne.s32.totalorder %s37, %s38
      %p52 = scmp.eq.s32.totalorder %s30, 1
      %p53 = por %p51, %p52
      %p55 = scmp.ne.s32.totalorder %s38, %s54
      %p56 = scmp.eq.s32.totalorder %s30, 0
      %p57 = por %p55, %p56
      %s58 = ssub.s32 %s24, %s31
      %p59 = scmp.eq.s32.totalorder %s58, 0
      %s61 = sadd.s32 %s60, 1
      %s62 = scalar_select %p59, %s60, %s61
      %p65 = pneg %p59
      %p66 = scmp.eq.s32.totalorder %s24, 1
      %p67 = por %p65, %p66
      %p68 = scmp.ne.s32.totalorder %s60, %s63
      %p69 = scmp.eq.s32.totalorder %s24, 0
      %p70 = por %p68, %p69
      %p71 = scmp.ne.s32.totalorder %s60, %s63
      %p72 = scmp.eq.s32.totalorder %s29, 1
      %p73 = por %p71, %p72
      %p74 = scmp.ne.s32.totalorder %s63, %s64
      %p75 = scmp.eq.s32.totalorder %s29, 0
      %p76 = por %p74, %p75
      %p77 = scmp.ne.s32.totalorder %s63, %s64
      %p78 = scmp.eq.s32.totalorder %s30, 1
      %p79 = por %p77, %p78
      %p81 = scmp.ne.s32.totalorder %s64, %s80
      %p82 = scmp.eq.s32.totalorder %s30, 0
      %p83 = por %p81, %p82
      %s85 = sadd.s32 %s84, 1
      %p88 = scmp.eq.s32.totalorder %s24, 1
      %p89 = scmp.ne.s32.totalorder %s84, %s86
      %p90 = scmp.eq.s32.totalorder %s24, 0
      %p91 = por %p89, %p90
      %p92 = scmp.ne.s32.totalorder %s84, %s86
      %p93 = scmp.eq.s32.totalorder %s29, 1
      %p94 = por %p92, %p93
      %p95 = scmp.ne.s32.totalorder %s86, %s87
      %p96 = scmp.eq.s32.totalorder %s29, 0
      %p97 = por %p95, %p96
      %p98 = scmp.ne.s32.totalorder %s86, %s87
      %p99 = scmp.eq.s32.totalorder %s30, 1
      %p100 = por %p98, %p99
      %p102 = scmp.ne.s32.totalorder %s87, %s101
      %p103 = scmp.eq.s32.totalorder %s30, 0
      %p104 = por %p102, %p103
      %s106 = sadd.s32 %s105, 1
      %p109 = scmp.eq.s32.totalorder %s24, 1
      %p110 = scmp.ne.s32.totalorder %s105, %s107
      %p111 = scmp.eq.s32.totalorder %s24, 0
      %p112 = por %p110, %p111
      %p113 = scmp.ne.s32.totalorder %s105, %s107
      %p114 = scmp.eq.s32.totalorder %s29, 1
      %p115 = por %p113, %p114
      %p116 = scmp.ne.s32.totalorder %s107, %s108
      %p117 = scmp.eq.s32.totalorder %s29, 0
      %p118 = por %p116, %p117
      %p119 = scmp.ne.s32.totalorder %s107, %s108
      %p120 = scmp.eq.s32.totalorder %s30, 1
      %p121 = por %p119, %p120
      %p123 = scmp.ne.s32.totalorder %s108, %s122
      %p124 = scmp.eq.s32.totalorder %s30, 0
      %p125 = por %p123, %p124
      %s127 = sadd.s32 %s126, 1
      %p130 = scmp.eq.s32.totalorder %s24, 1
      %p131 = scmp.ne.s32.totalorder %s126, %s128
      %p132 = scmp.eq.s32.totalorder %s24, 0
      %p133 = por %p131, %p132
      %p134 = scmp.ne.s32.totalorder %s126, %s128
      %p135 = scmp.eq.s32.totalorder %s29, 1
      %p136 = por %p134, %p135
      %p137 = scmp.ne.s32.totalorder %s128, %s129
      %p138 = scmp.eq.s32.totalorder %s29, 0
      %p139 = por %p137, %p138
      %p140 = scmp.ne.s32.totalorder %s128, %s129
      %p141 = scmp.eq.s32.totalorder %s30, 1
      %p142 = por %p140, %p141
      %p144 = scmp.ne.s32.totalorder %s129, %s143
      %p145 = scmp.eq.s32.totalorder %s30, 0
      %p146 = por %p144, %p145
      %s148 = sadd.s32 %s147, 1
      %p151 = scmp.eq.s32.totalorder %s24, 1
      %p152 = scmp.ne.s32.totalorder %s147, %s149
      %p153 = scmp.eq.s32.totalorder %s24, 0
      %p154 = por %p152, %p153
      %p155 = scmp.ne.s32.totalorder %s147, %s149
      %p156 = scmp.eq.s32.totalorder %s29, 1
      %p157 = por %p155, %p156
      %p158 = scmp.ne.s32.totalorder %s149, %s150
      %p159 = scmp.eq.s32.totalorder %s29, 0
      %p160 = por %p158, %p159
      %p161 = scmp.ne.s32.totalorder %s149, %s150
      %p162 = scmp.eq.s32.totalorder %s30, 1
      %p163 = por %p161, %p162
      %p165 = scmp.ne.s32.totalorder %s150, %s164
      %p166 = scmp.eq.s32.totalorder %s30, 0
      %p167 = por %p165, %p166
      %s169 = sadd.s32 %s168, 1
      %p172 = scmp.eq.s32.totalorder %s24, 1
      %p173 = scmp.ne.s32.totalorder %s168, %s170
      %p174 = scmp.eq.s32.totalorder %s24, 0
      %p175 = por %p173, %p174
      %p176 = scmp.ne.s32.totalorder %s168, %s170
      %p177 = scmp.eq.s32.totalorder %s29, 1
      %p178 = por %p176, %p177
      %p179 = scmp.ne.s32.totalorder %s170, %s171
      %p180 = scmp.eq.s32.totalorder %s29, 0
      %p181 = por %p179, %p180
      %p182 = scmp.ne.s32.totalorder %s170, %s171
      %p183 = scmp.eq.s32.totalorder %s30, 1
      %p184 = por %p182, %p183
      %p186 = scmp.ne.s32.totalorder %s171, %s185
      %p187 = scmp.eq.s32.totalorder %s30, 0
      %p188 = por %p186, %p187
      %s190 = sadd.s32 %s189, 1
      %p193 = scmp.eq.s32.totalorder %s24, 1
      %p194 = scmp.ne.s32.totalorder %s189, %s191
      %p195 = scmp.eq.s32.totalorder %s24, 0
      %p196 = por %p194, %p195
      %p197 = scmp.ne.s32.totalorder %s189, %s191
      %p198 = scmp.eq.s32.totalorder %s29, 1
      %p199 = por %p197, %p198
      %p200 = scmp.ne.s32.totalorder %s191, %s192
      %p201 = scmp.eq.s32.totalorder %s29, 0
      %p202 = por %p200, %p201
      %p203 = scmp.ne.s32.totalorder %s191, %s192
      %p204 = scmp.eq.s32.totalorder %s30, 1
      %p205 = por %p203, %p204
      %p207 = scmp.ne.s32.totalorder %s192, %s206
      %p208 = scmp.eq.s32.totalorder %s30, 0
      %p209 = por %p207, %p208
      %s210 = ssub.s32 %s24, %s31
      %p211 = scmp.eq.s32.totalorder %s210, 0
      %s213 = sadd.s32 %s212, 1
      %s214 = scalar_select %p211, %s212, %s213
      %p217 = pneg %p211
      %p218 = scmp.eq.s32.totalorder %s24, 1
      %p219 = por %p217, %p218
      %p220 = scmp.ne.s32.totalorder %s212, %s215
      %p221 = scmp.eq.s32.totalorder %s24, 0
      %p222 = por %p220, %p221
      %p223 = scmp.ne.s32.totalorder %s212, %s215
      %p224 = scmp.eq.s32.totalorder %s29, 1
      %p225 = por %p223, %p224
      %p226 = scmp.ne.s32.totalorder %s215, %s216
      %p227 = scmp.eq.s32.totalorder %s29, 0
      %p228 = por %p226, %p227
      %p229 = scmp.ne.s32.totalorder %s215, %s216
      %p230 = scmp.eq.s32.totalorder %s30, 1
      %p231 = por %p229, %p230
      %p233 = scmp.ne.s32.totalorder %s216, %s232
      %p234 = scmp.eq.s32.totalorder %s30, 0
      %p235 = por %p233, %p234
      %p236 = scmp.le.s32.totalorder 1, %s24
      %p237 = scmp.lt.s32.totalorder %s24, 3
      %p238 = pnand %p236, %p237
      %p239 = pneg %p238
      // Predicated region
      $region9: #{tpu_custom_call.1} parent=5 // pred_check
        _
      $region10: #{tpu_custom_call.1} parent=5 // pred_check_branch
        %241 = sbr.rel (%p238) target = $region12
      $region11: #{tpu_custom_call.1} parent=5 // pred_region
        %s242 = ssub.s32 %s24, 1
        // Predicated region
        $region13: #{tpu_custom_call.1} parent=11 // pred_check
          %p243 = pneg %p97
        $region14: #{tpu_custom_call.1} parent=11 // pred_check_branch
          %245 = sbr.rel (%p243) target = $region16
        $region15: #{tpu_custom_call.1} parent=11 // pred_region
          %s247 = ssub.s32 256, 256
          %248 = vsyncadd [#allocation6], %s247
          %s249 = sshll.u32 [#allocation7], 4
          %s250 = int_to_ptr.vmem [resolvable:$true] %s249
          %255 = dma.hbm_to_vmem [thread:$0]  %s2, 256, %s250, [#allocation6], 64, 64, 4
        $region16: #{tpu_custom_call.1} parent=11 // pred_fallthru
          _
        // Predicated region
        $region17: #{tpu_custom_call.1} parent=11 // pred_check
          %p256 = pneg %p118
        $region18: #{tpu_custom_call.1} parent=11 // pred_check_branch
          %258 = sbr.rel (%p256) target = $region20
        $region19: #{tpu_custom_call.1} parent=11 // pred_region
          _
        $region20: #{tpu_custom_call.1} parent=11 // pred_fallthru
          _
        // Predicated region
        $region21: #{tpu_custom_call.1} parent=11 // pred_check
          %p259 = pneg %p139
        $region22: #{tpu_custom_call.1} parent=11 // pred_check_branch
          %261 = sbr.rel (%p259) target = $region24
        $region23: #{tpu_custom_call.1} parent=11 // pred_region
          %s263 = ssub.s32 256, 256
          %264 = vsyncadd [#allocation9], %s263
          %s265 = sshll.u32 [#allocation8], 4
          %s266 = int_to_ptr.vmem [resolvable:$true] %s265
          %271 = dma.hbm_to_vmem [thread:$0]  %s4, 256, %s266, [#allocation9], 64, 64, 4
        $region24: #{tpu_custom_call.1} parent=11 // pred_fallthru
          _
        // Predicated region
        $region25: #{tpu_custom_call.1} parent=11 // pred_check
          %p272 = pneg %p160
        $region26: #{tpu_custom_call.1} parent=11 // pred_check_branch
          %274 = sbr.rel (%p272) target = $region28
        $region27: #{tpu_custom_call.1} parent=11 // pred_region
          _
        $region28: #{tpu_custom_call.1} parent=11 // pred_fallthru
          _
        // Predicated region
        $region29: #{tpu_custom_call.1} parent=11 // pred_check
          %p275 = pneg %p181
        $region30: #{tpu_custom_call.1} parent=11 // pred_check_branch
          %277 = sbr.rel (%p275) target = $region32
        $region31: #{tpu_custom_call.1} parent=11 // pred_region
          %s279 = ssub.s32 256, 256
          %280 = vsyncadd [#allocation9], %s279
          %s281 = sshll.u32 [#allocation10], 4
          %s282 = int_to_ptr.vmem [resolvable:$true] %s281
          %287 = dma.hbm_to_vmem [thread:$0]  %s6, 256, %s282, [#allocation9], 64, 64, 4
        $region32: #{tpu_custom_call.1} parent=11 // pred_fallthru
          _
        // Predicated region
        $region33: #{tpu_custom_call.1} parent=11 // pred_check
          %p288 = pneg %p202
        $region34: #{tpu_custom_call.1} parent=11 // pred_check_branch
          %290 = sbr.rel (%p288) target = $region36
        $region35: #{tpu_custom_call.1} parent=11 // pred_region
          _
        $region36: #{tpu_custom_call.1} parent=11 // pred_fallthru
          _
      $region12: #{tpu_custom_call.1} parent=5 // pred_fallthru
        _
      %p291 = scmp.lt.s32.totalorder %s24, 2
      // Predicated region
      $region37: #{tpu_custom_call.1} parent=5 // pred_check
        %p292 = pneg %p291
      $region38: #{tpu_custom_call.1} parent=5 // pred_check_branch
        %294 = sbr.rel (%p292) target = $region40
      $region39: #{tpu_custom_call.1} parent=5 // pred_region
        // Predicated region
        $region41: #{tpu_custom_call.1} parent=39 // pred_check
          %p295 = pneg %p44
        $region42: #{tpu_custom_call.1} parent=39 // pred_check_branch
          %297 = sbr.rel (%p295) target = $region44
        $region43: #{tpu_custom_call.1} parent=39 // pred_region
          %s298 = sand.u32 %s34, 1
          %s299 = scalar_lea.sflag [#allocation3], %s298
          %s300 = sand.u32 %s34, 1
          %s301 = smul.addr %s300, 4
          %s302 = scalar_lea.vmem [#allocation2], %s301
          %s304 = ssub.s32 64, 64
          %305 = vsyncadd %s299, %s304
          %s306 = smul.addr %s24, 64
          %s307 = scalar_lea.hbm %s0, %s306
          %s309 = sshll.u32 %s302, 4
          %s310 = int_to_ptr.vmem [resolvable:$true] %s309
          %312 = dma.hbm_to_vmem [thread:$0]  %s307, 64, %s310, %s299
        $region44: #{tpu_custom_call.1} parent=39 // pred_fallthru
          _
        // Predicated region
        $region45: #{tpu_custom_call.1} parent=39 // pred_check
          %p313 = pneg %p70
        $region46: #{tpu_custom_call.1} parent=39 // pred_check_branch
          %315 = sbr.rel (%p313) target = $region48
        $region47: #{tpu_custom_call.1} parent=39 // pred_region
          %s316 = sand.u32 %s24, 1
          %s317 = scalar_lea.sflag [#allocation6], %s316
          %s318 = sand.u32 %s60, 1
          %s319 = smul.addr %s318, 4
          %s320 = scalar_lea.vmem [#allocation5], %s319
          %s322 = ssub.s32 64, 64
          %323 = vsyncadd %s317, %s322
          %s324 = smul.addr %s24, 64
          %s325 = scalar_lea.hbm %s1, %s324
          %s327 = sshll.u32 %s320, 4
          %s328 = int_to_ptr.vmem [resolvable:$true] %s327
          %330 = dma.hbm_to_vmem [thread:$0]  %s325, 64, %s328, %s317
        $region48: #{tpu_custom_call.1} parent=39 // pred_fallthru
          _
      $region40: #{tpu_custom_call.1} parent=5 // pred_fallthru
        _
      %p331 = scmp.le.s32.totalorder 1, %s24
      %p332 = scmp.lt.s32.totalorder %s24, 3
      %p333 = pnand %p331, %p332
      %p334 = pneg %p333
      // Predicated region
      $region49: #{tpu_custom_call.1} parent=5 // pred_check
        _
      $region50: #{tpu_custom_call.1} parent=5 // pred_check_branch
        %336 = sbr.rel (%p333) target = $region52
      $region51: #{tpu_custom_call.1} parent=5 // pred_region
        %s337 = ssub.s32 %s24, 1
        %s338 = sand.u32 %s37, 1
        %s339 = scalar_lea.sflag [#allocation3], %s338
        %s340 = sand.u32 %s37, 1
        %s341 = smul.addr %s340, 4
        %s342 = scalar_lea.vmem [#allocation2], %s341
        // Predicated region
        $region53: #{tpu_custom_call.1} parent=51 // pred_check
          %p343 = pneg %p50
        $region54: #{tpu_custom_call.1} parent=51 // pred_check_branch
          %345 = sbr.rel (%p343) target = $region56
        $region55: #{tpu_custom_call.1} parent=51 // pred_region
          %346 = dma.done %s339, 64
        $region56: #{tpu_custom_call.1} parent=51 // pred_fallthru
          _
        %s347 = sand.u32 %s29, 1
        %s348 = scalar_lea.sflag [#allocation6], %s347
        %s349 = sand.u32 %s63, 1
        %s350 = smul.addr %s349, 4
        %s351 = scalar_lea.vmem [#allocation5], %s350
        // Predicated region
        $region57: #{tpu_custom_call.1} parent=51 // pred_check
          %p352 = pneg %p76
        $region58: #{tpu_custom_call.1} parent=51 // pred_check_branch
          %354 = sbr.rel (%p352) target = $region60
        $region59: #{tpu_custom_call.1} parent=51 // pred_region
          %355 = dma.done %s348, 64
        $region60: #{tpu_custom_call.1} parent=51 // pred_fallthru
          _
        // Predicated region
        $region61: #{tpu_custom_call.1} parent=51 // pred_check
          %p356 = pneg %p97
        $region62: #{tpu_custom_call.1} parent=51 // pred_check_branch
          %358 = sbr.rel (%p356) target = $region64
        $region63: #{tpu_custom_call.1} parent=51 // pred_region
          %359 = dma.done [#allocation6], 256
        $region64: #{tpu_custom_call.1} parent=51 // pred_fallthru
          _
        // Predicated region
        $region65: #{tpu_custom_call.1} parent=51 // pred_check
          %p360 = pneg %p139
        $region66: #{tpu_custom_call.1} parent=51 // pred_check_branch
          %362 = sbr.rel (%p360) target = $region68
        $region67: #{tpu_custom_call.1} parent=51 // pred_region
          %363 = dma.done [#allocation9], 256
        $region68: #{tpu_custom_call.1} parent=51 // pred_fallthru
          _
        // Predicated region
        $region69: #{tpu_custom_call.1} parent=51 // pred_check
          %p364 = pneg %p181
        $region70: #{tpu_custom_call.1} parent=51 // pred_check_branch
          %366 = sbr.rel (%p364) target = $region72
        $region71: #{tpu_custom_call.1} parent=51 // pred_region
          %367 = dma.done [#allocation9], 256
        $region72: #{tpu_custom_call.1} parent=51 // pred_fallthru
          _
        %s368 = sand.u32 %s37, 1
        %s369 = scalar_lea.sflag [#allocation3], %s368
        %s370 = sand.u32 %s37, 1
        %s371 = smul.addr %s370, 4
        %s372 = scalar_lea.vmem [#allocation2], %s371
        %p373 = pneg %p50
        %p374 = pneg %p47
        %s375 = sand.u32 %s29, 1
        %s376 = scalar_lea.sflag [#allocation6], %s375
        %s377 = sand.u32 %s63, 1
        %s378 = smul.addr %s377, 4
        %s379 = scalar_lea.vmem [#allocation5], %s378
        %p380 = pneg %p76
        %p381 = pneg %p73
        %p382 = pneg %p97
        %p383 = pneg %p94
        %p384 = pneg %p118
        %p385 = pneg %p115
        %p386 = pneg %p139
        %p387 = pneg %p136
        %p388 = pneg %p160
        %p389 = pneg %p157
        %p390 = pneg %p181
        %p391 = pneg %p178
        %p392 = pneg %p202
        %p393 = pneg %p199
        %p394 = pneg %p228
        %p395 = pneg %p225
        %s396 = sand.u32 %s215, 1
        %s397 = scalar_lea.sflag [#allocation4], %s396
        %s398 = sand.u32 %s215, 1
        %s399 = smul.addr %s398, 8
        %s400 = scalar_lea.vmem [#allocation11], %s399
        %v402 = vld [vmem:[%s342] sm:$0xf]
        %v403 = vld [vmem:[%s351] sm:$0xf]
        %v404 = vld [vmem:[#allocation7] sm:$0xf]
        %v405 = vld [vmem:[#allocation7 + $0x4] sm:$0xf]
        %v406 = vld [vmem:[#allocation7 + $0x8] sm:$0xf]
        %v407 = vld [vmem:[#allocation7 + $0xc] sm:$0xf]
        %v408 = vld [vmem:[%s3] sm:$0x1]
        %v410 = vlaneseq
        %v411 = vshrl.u32 %v410, 7
        %v412 = vsub.s32 0, %v411
        %v413 = vrot.slane %v408, %v412
        %v419 = vunpack.c.l.b16 %v404
        %v420 = vunpack.c.l.b16 %v405
        %v421 = vunpack.c.l.b16 %v406
        %v422 = vunpack.c.l.b16 %v407
        %v423 = vpack.c.b16 %v420, %v419
        %v424 = vpack.c.b16 %v422, %v421
        %vm427 = vcmask 261120
        %v429 = vsel %vm427, %v402, 0
        %431 = vmatprep.subr.bf16.mxu0 0
        %432 = vmatpush1.bf16.msra.mxu0 0
        %433 = vmatprep.subr.bf16.mxu0 0
        %434 = vmatpush1.bf16.msra.mxu0 0
        %435 = vmatprep.subr.bf16.mxu0 0
        %436 = vmatpush1.bf16.msra.mxu0 0
        %437 = vmatprep.subr.bf16.mxu0 0
        %438 = vmatpush1.bf16.msra.mxu0 0
        %439 = vmatprep.subr.bf16.mxu0 0
        %440 = vmatpush1.bf16.msra.mxu0 0
        %441 = vmatprep.subr.bf16.mxu0 0
        %442 = vmatpush1.bf16.msra.mxu0 0
        %443 = vmatprep.subr.bf16.mxu0 0
        %444 = vmatpush1.bf16.msra.mxu0 %v424
        %445 = vmatprep.subr.bf16.mxu0 0
        %446 = vmatpush1.bf16.msra.mxu0 %v423
        %447 = vmatprep.subr.bf16.mxu0 0
        %448 = vmatpush2.bf16.msra.mxu0 0
        %449 = vmatprep.subr.bf16.mxu0 0
        %450 = vmatpush2.bf16.msra.mxu0 0
        %451 = vmatprep.subr.bf16.mxu0 0
        %452 = vmatpush2.bf16.msra.mxu0 0
        %453 = vmatprep.subr.bf16.mxu0 0
        %454 = vmatpush2.bf16.msra.mxu0 0
        %455 = vmatprep.subr.bf16.mxu0 0
        %456 = vmatpush2.bf16.msra.mxu0 0
        %457 = vmatprep.subr.bf16.mxu0 0
        %458 = vmatpush2.bf16.msra.mxu0 0
        %459 = vmatprep.subr.bf16.mxu0 0
        %460 = vmatpush2.bf16.msra.mxu0 0
        %461 = vmatprep.subr.bf16.mxu0 0
        %462 = vmatpush2.bf16.msra.mxu0 0
        %463 = vmatprep.mubr.bf16.mxu0 0
        %464 = vmatmul.mubr.bf16.gmra.mxu0 %v429
        %v465 = vpop.f32.mrf.mxu0
        %v466 = vadd.f32 %v413, %v465
        %v467 = vpop.f32.mrf.mxu0
        %v468 = vpop.f32.mrf.mxu0
        %v469 = vpop.f32.mrf.mxu0
        %470 = vdwg.mxu0
        %v471 = vld [vmem:[#allocation8] sm:$0xf]
        %v472 = vld [vmem:[#allocation8 + $0x4] sm:$0xf]
        %v473 = vld [vmem:[#allocation8 + $0x8] sm:$0xf]
        %v474 = vld [vmem:[#allocation8 + $0xc] sm:$0xf]
        %v475 = vld [vmem:[%s5] sm:$0x1]
        %v477 = vlaneseq
        %v478 = vshrl.u32 %v477, 7
        %v479 = vsub.s32 0, %v478
        %v480 = vrot.slane %v475, %v479
        %v486 = vunpack.c.l.b16 %v471
        %v487 = vunpack.c.l.b16 %v472
        %v488 = vunpack.c.l.b16 %v473
        %v489 = vunpack.c.l.b16 %v474
        %v490 = vpack.c.b16 %v487, %v486
        %v491 = vpack.c.b16 %v489, %v488
        %494 = vmatprep.subr.bf16.mxu0 0
        %495 = vmatpush1.bf16.msra.mxu0 0
        %496 = vmatprep.subr.bf16.mxu0 0
        %497 = vmatpush1.bf16.msra.mxu0 0
        %498 = vmatprep.subr.bf16.mxu0 0
        %499 = vmatpush1.bf16.msra.mxu0 0
        %500 = vmatprep.subr.bf16.mxu0 0
        %501 = vmatpush1.bf16.msra.mxu0 0
        %502 = vmatprep.subr.bf16.mxu0 0
        %503 = vmatpush1.bf16.msra.mxu0 0
        %504 = vmatprep.subr.bf16.mxu0 0
        %505 = vmatpush1.bf16.msra.mxu0 0
        %506 = vmatprep.subr.bf16.mxu0 0
        %507 = vmatpush1.bf16.msra.mxu0 %v491
        %508 = vmatprep.subr.bf16.mxu0 0
        %509 = vmatpush1.bf16.msra.mxu0 %v490
        %510 = vmatprep.subr.bf16.mxu0 0
        %511 = vmatpush2.bf16.msra.mxu0 0
        %512 = vmatprep.subr.bf16.mxu0 0
        %513 = vmatpush2.bf16.msra.mxu0 0
        %514 = vmatprep.subr.bf16.mxu0 0
        %515 = vmatpush2.bf16.msra.mxu0 0
        %516 = vmatprep.subr.bf16.mxu0 0
        %517 = vmatpush2.bf16.msra.mxu0 0
        %518 = vmatprep.subr.bf16.mxu0 0
        %519 = vmatpush2.bf16.msra.mxu0 0
        %520 = vmatprep.subr.bf16.mxu0 0
        %521 = vmatpush2.bf16.msra.mxu0 0
        %522 = vmatprep.subr.bf16.mxu0 0
        %523 = vmatpush2.bf16.msra.mxu0 0
        %524 = vmatprep.subr.bf16.mxu0 0
        %525 = vmatpush2.bf16.msra.mxu0 0
        %526 = vmatprep.mubr.bf16.mxu0 0
        %527 = vmatmul.mubr.bf16.gmra.mxu0 %v429
        %v528 = vpop.f32.mrf.mxu0
        %v529 = vadd.f32 %v480, %v528
        %v530 = vpop.f32.mrf.mxu0
        %v531 = vpop.f32.mrf.mxu0
        %v532 = vpop.f32.mrf.mxu0
        %533 = vdwg.mxu0
        %v534 = vld [vmem:[#allocation10] sm:$0xf]
        %v535 = vld [vmem:[#allocation10 + $0x4] sm:$0xf]
        %v536 = vld [vmem:[#allocation10 + $0x8] sm:$0xf]
        %v537 = vld [vmem:[#allocation10 + $0xc] sm:$0xf]
        %v538 = vld [vmem:[%s7] sm:$0x1]
        %v540 = vlaneseq
        %v541 = vshrl.u32 %v540, 7
        %v542 = vsub.s32 0, %v541
        %v543 = vrot.slane %v538, %v542
        %v549 = vunpack.c.l.b16 %v534
        %v550 = vunpack.c.l.b16 %v535
        %v551 = vunpack.c.l.b16 %v536
        %v552 = vunpack.c.l.b16 %v537
        %v553 = vpack.c.b16 %v550, %v549
        %v554 = vpack.c.b16 %v552, %v551
        %v558 = vsel %vm427, %v403, 0
        %560 = vmatprep.subr.bf16.mxu0 0
        %561 = vmatpush1.bf16.msra.mxu0 0
        %562 = vmatprep.subr.bf16.mxu0 0
        %563 = vmatpush1.bf16.msra.mxu0 0
        %564 = vmatprep.subr.bf16.mxu0 0
        %565 = vmatpush1.bf16.msra.mxu0 0
        %566 = vmatprep.subr.bf16.mxu0 0
        %567 = vmatpush1.bf16.msra.mxu0 0
        %568 = vmatprep.subr.bf16.mxu0 0
        %569 = vmatpush1.bf16.msra.mxu0 0
        %570 = vmatprep.subr.bf16.mxu0 0
        %571 = vmatpush1.bf16.msra.mxu0 0
        %572 = vmatprep.subr.bf16.mxu0 0
        %573 = vmatpush1.bf16.msra.mxu0 %v554
        %574 = vmatprep.subr.bf16.mxu0 0
        %575 = vmatpush1.bf16.msra.mxu0 %v553
        %576 = vmatprep.subr.bf16.mxu0 0
        %577 = vmatpush2.bf16.msra.mxu0 0
        %578 = vmatprep.subr.bf16.mxu0 0
        %579 = vmatpush2.bf16.msra.mxu0 0
        %580 = vmatprep.subr.bf16.mxu0 0
        %581 = vmatpush2.bf16.msra.mxu0 0
        %582 = vmatprep.subr.bf16.mxu0 0
        %583 = vmatpush2.bf16.msra.mxu0 0
        %584 = vmatprep.subr.bf16.mxu0 0
        %585 = vmatpush2.bf16.msra.mxu0 0
        %586 = vmatprep.subr.bf16.mxu0 0
        %587 = vmatpush2.bf16.msra.mxu0 0
        %588 = vmatprep.subr.bf16.mxu0 0
        %589 = vmatpush2.bf16.msra.mxu0 0
        %590 = vmatprep.subr.bf16.mxu0 0
        %591 = vmatpush2.bf16.msra.mxu0 0
        %592 = vmatprep.mubr.bf16.mxu0 0
        %593 = vmatmul.mubr.bf16.gmra.mxu0 %v558
        %v594 = vpop.f32.mrf.mxu0
        %v595 = vadd.f32 %v543, %v594
        %v596 = vpop.f32.mrf.mxu0
        %v597 = vpop.f32.mrf.mxu0
        %v598 = vpop.f32.mrf.mxu0
        %599 = vdwg.mxu0
        %v600 = vmul.f32 %v595, 0.17677669
        %v601 = vpack.c.bf16 %v600, %v600
        %v602 = vpack.c.bf16 %v529, %v529
        %603 = vmatprep.subr.bf16.mxu0 0
        %604 = vmatpush1.bf16.xpose.msra.mxu0 0
        %605 = vmatprep.subr.bf16.mxu0 0
        %606 = vmatpush1.bf16.xpose.msra.mxu0 0
        %607 = vmatprep.subr.bf16.mxu0 0
        %608 = vmatpush1.bf16.xpose.msra.mxu0 0
        %609 = vmatprep.subr.bf16.mxu0 0
        %610 = vmatpush1.bf16.xpose.msra.mxu0 0
        %611 = vmatprep.subr.bf16.mxu0 0
        %612 = vmatpush1.bf16.xpose.msra.mxu0 0
        %613 = vmatprep.subr.bf16.mxu0 0
        %614 = vmatpush1.bf16.xpose.msra.mxu0 0
        %615 = vmatprep.subr.bf16.mxu0 0
        %616 = vmatpush1.bf16.xpose.msra.mxu0 0
        %617 = vmatprep.subr.bf16.mxu0 0
        %618 = vmatpush1.bf16.xpose.msra.mxu0 %v602
        %619 = vmatprep.subr.bf16.mxu0 0
        %620 = vmatpush2.bf16.xpose.msra.mxu0 0
        %621 = vmatprep.subr.bf16.mxu0 0
        %622 = vmatpush2.bf16.xpose.msra.mxu0 0
        %623 = vmatprep.subr.bf16.mxu0 0
        %624 = vmatpush2.bf16.xpose.msra.mxu0 0
        %625 = vmatprep.subr.bf16.mxu0 0
        %626 = vmatpush2.bf16.xpose.msra.mxu0 0
        %627 = vmatprep.subr.bf16.mxu0 0
        %628 = vmatpush2.bf16.xpose.msra.mxu0 0
        %629 = vmatprep.subr.bf16.mxu0 0
        %630 = vmatpush2.bf16.xpose.msra.mxu0 0
        %631 = vmatprep.subr.bf16.mxu0 0
        %632 = vmatpush2.bf16.xpose.msra.mxu0 0
        %633 = vmatprep.subr.bf16.mxu0 0
        %634 = vmatpush2.bf16.xpose.msra.mxu0 0
        %635 = vmatprep.mubr.bf16.mxu0 0
        %636 = vmatmul.mubr.bf16.gmra.mxu0 %v601
        %v637 = vpop.f32.mrf.mxu0
        %v638 = vadd.f32 0.0, %v637
        %v639 = vpop.f32.mrf.mxu0
        %v640 = vpop.f32.mrf.mxu0
        %v641 = vpop.f32.mrf.mxu0
        %642 = vdwg.mxu0
        %vm643 = vcmask 64512
        %v644 = vsel %vm643, %v638, -inf
        %645 = vmax.xlane.f32.xlu0 %v644
        %v646 = vpop.xlane.xlu0 %645
        %v647 = vsub.f32 %v638, %v646
        %v648 = vmul.f32 %v647, 1.442695
        %v649 = vpow.pop %v648
        %v650 = vsel %vm643, %v649, 0.0
        %651 = vadd.xlane.f32.xlu0 %v650
        %v652 = vpop.xlane.xlu0 %651
        %v653 = vrcp.pop %v652
        %v654 = vmul.f32 %v649, %v653
        %v655 = vpack.c.bf16 %v654, %v654
        %v656 = vpack.c.bf16 %v466, %v466
        %v658 = vsel %vm643, %v655, 0
        %vm660 = vcmask 1043456
        %v662 = vsel %vm660, %v656, 0
        %664 = vmatprep.subr.bf16.mxu0 0
        %665 = vmatpush1.bf16.msra.mxu0 0
        %666 = vmatprep.subr.bf16.mxu0 0
        %667 = vmatpush1.bf16.msra.mxu0 0
        %668 = vmatprep.subr.bf16.mxu0 0
        %669 = vmatpush1.bf16.msra.mxu0 0
        %670 = vmatprep.subr.bf16.mxu0 0
        %671 = vmatpush1.bf16.msra.mxu0 0
        %672 = vmatprep.subr.bf16.mxu0 0
        %673 = vmatpush1.bf16.msra.mxu0 0
        %674 = vmatprep.subr.bf16.mxu0 0
        %675 = vmatpush1.bf16.msra.mxu0 0
        %676 = vmatprep.subr.bf16.mxu0 0
        %677 = vmatpush1.bf16.msra.mxu0 0
        %678 = vmatprep.subr.bf16.mxu0 0
        %679 = vmatpush1.bf16.msra.mxu0 %v662
        %680 = vmatprep.subr.bf16.mxu0 0
        %681 = vmatpush2.bf16.msra.mxu0 0
        %682 = vmatprep.subr.bf16.mxu0 0
        %683 = vmatpush2.bf16.msra.mxu0 0
        %684 = vmatprep.subr.bf16.mxu0 0
        %685 = vmatpush2.bf16.msra.mxu0 0
        %686 = vmatprep.subr.bf16.mxu0 0
        %687 = vmatpush2.bf16.msra.mxu0 0
        %688 = vmatprep.subr.bf16.mxu0 0
        %689 = vmatpush2.bf16.msra.mxu0 0
        %690 = vmatprep.subr.bf16.mxu0 0
        %691 = vmatpush2.bf16.msra.mxu0 0
        %692 = vmatprep.subr.bf16.mxu0 0
        %693 = vmatpush2.bf16.msra.mxu0 0
        %694 = vmatprep.subr.bf16.mxu0 0
        %695 = vmatpush2.bf16.msra.mxu0 0
        %696 = vmatprep.mubr.bf16.mxu0 0
        %697 = vmatmul.mubr.bf16.gmra.mxu0 %v658
        %v698 = vpop.f32.mrf.mxu0
        %v699 = vadd.f32 0.0, %v698
        %v700 = vpop.f32.mrf.mxu0
        %v701 = vpop.f32.mrf.mxu0
        %v702 = vpop.f32.mrf.mxu0
        %703 = vdwg.mxu0
        %704 = vst [vmem:[%s400] sm:$0xff] %v699
        %s705 = sand.u32 %s215, 1
        %s706 = scalar_lea.sflag [#allocation4], %s705
        %s707 = sand.u32 %s215, 1
        %s708 = smul.addr %s707, 8
        %s709 = scalar_lea.vmem [#allocation11], %s708
        // Predicated region
        $region73: #{tpu_custom_call.1} parent=51 // pred_check
          %p710 = pneg %p225
        $region74: #{tpu_custom_call.1} parent=51 // pred_check_branch
          %712 = sbr.rel (%p710) target = $region76
        $region75: #{tpu_custom_call.1} parent=51 // pred_region
          %s714 = ssub.s32 128, 128
          %715 = vsyncadd %s706, %s714
          %s716 = smul.addr %s29, 128
          %s717 = scalar_lea.hbm %s8, %s716
          %s719 = sshll.u32 %s709, 4
          %s720 = int_to_ptr.vmem [resolvable:$true] %s719
          %722 = dma.vmem_to_hbm [thread:$0]  %s720, 128, %s717, %s706
        $region76: #{tpu_custom_call.1} parent=51 // pred_fallthru
          _
      $region52: #{tpu_custom_call.1} parent=5 // pred_fallthru
        _
      %p723 = scmp.le.s32.totalorder 2, %s24
      // Predicated region
      $region77: #{tpu_custom_call.1} parent=5 // pred_check
        %p724 = pneg %p723
      $region78: #{tpu_custom_call.1} parent=5 // pred_check_branch
        %726 = sbr.rel (%p724) target = $region80
      $region79: #{tpu_custom_call.1} parent=5 // pred_region
        %s727 = ssub.s32 %s24, 2
        // Predicated region
        $region81: #{tpu_custom_call.1} parent=79 // pred_check
          %p728 = pneg %p231
        $region82: #{tpu_custom_call.1} parent=79 // pred_check_branch
          %730 = sbr.rel (%p728) target = $region84
        $region83: #{tpu_custom_call.1} parent=79 // pred_region
          %s731 = sand.u32 %s216, 1
          %s732 = scalar_lea.sflag [#allocation4], %s731
          %s733 = sand.u32 %s216, 1
          %s734 = smul.addr %s733, 8
          %s735 = scalar_lea.vmem [#allocation11], %s734
          %736 = dma.done %s732, 128
        $region84: #{tpu_custom_call.1} parent=79 // pred_fallthru
          _
      $region80: #{tpu_custom_call.1} parent=5 // pred_fallthru
        _
    $region6: #{tpu_custom_call.1} parent=1 // loop_footer
      %s28 = sadd.s32 1, %s24
    $region7: #{tpu_custom_call.1} parent=1 // loop_footer_branch
      %23 = sbr.rel target = $region3
    $region8: #{tpu_custom_call.1} parent=1 // loop_exit
      _
    %737 = vsyncpa [#allocation3], 1
    %s738 = scalar_lea.sflag [#allocation3], 1
    %739 = vsyncpa %s738, 1
    %740 = vsyncpa [#allocation6], 1
    %s741 = scalar_lea.sflag [#allocation6], 1
    %742 = vsyncpa %s741, 1
    %743 = vsyncpa [#allocation9], 1
    %744 = vsyncpa [#allocation4], 1
    %s745 = scalar_lea.sflag [#allocation4], 1
    %746 = vsyncpa %s745, 1

</llo_original>
